<compile_context>
chip_gen: v7x
topology: tpu7x:2x2x1
jax: 0.10.0
libtpu: 0.0.40
codegen_flags: <defaults>
</compile_context>

<pallas_src>
import jax
import jax.numpy as jnp
from jax import lax
from jax.experimental import pallas as pl
from jax.experimental.pallas import tpu as pltpu

IN_FEATURES = 768
OUT_FEATURES = 2
LANE = 128


def _fakenews_kernel(x_ref, w_ref, b_ref, o_ref):
    # x_ref: [TM, 768]   streamed batch tile (f32 or bf16)
    # w_ref: [2, 768]    PyTorch Linear layout, resident across tiles
    # b_ref: [2, 1]      resident
    # o_ref: [2, TM]     lane-dense output tile (transposed back to [B,2] in the wrapper)
    x = x_ref[...]
    w = w_ref[...]
    # Contract both minor (lane) dims on the MXU: (2,768)·(TM,768) -> (2,TM), f32 accumulate.
    y = lax.dot_general(w, x, (((1,), (1,)), ((), ())),
                        preferred_element_type=jnp.float32)
    y = y + b_ref[...].astype(jnp.float32)            # [2,1] broadcasts along lanes
    # TODO(synk): Dropout(0.2) is identity in eval mode; training-mode dropout would need pltpu PRNG.
    y = jnp.tanh(y)            # EUP slot — free under the x-DMA bottleneck
    y = jax.nn.sigmoid(y)      # EUP slot
    o_ref[...] = y.astype(o_ref.dtype)


def _pick_tile(B, max_tm, target_grid=4):
    """Batch-tile rows.

    Tiny B: single full-extent block (always a legal block shape).
    Otherwise: a multiple of 128 lanes (lane-dense out layout requires it) chosen so the
    grid has >= 2 (ideally `target_grid`) tiles — keeps both v7x TensorCores busy and
    keeps DMA/compute pipelining alive — capped at max_tm.
    """
    if B <= LANE:
        return B
    per_tile = max(LANE, (B // target_grid) // LANE * LANE)
    return min(max_tm, per_tile)


def _vmem_limit_bytes(tm, x_itemsize):
    # x double buffer dominates; out tile is lane-dense so it pads only to 8 sublanes.
    x_stream = 2 * tm * IN_FEATURES * x_itemsize
    out_stream = 2 * 8 * max(tm, LANE) * 4
    resident = 2 * 8 * IN_FEATURES * 4 + 8 * LANE * 4          # padded w + b (generous)
    slack = 4 * 1024 * 1024                                    # compiler scratch headroom
    budget = x_stream + out_stream + resident + slack
    # Floor at the common scoped default; cap well under v7x's 64 MiB physical VMEM.
    return int(min(max(budget, 16 * 1024 * 1024), 48 * 1024 * 1024))


def fake_news_classifier(x, w, b, *, max_tm=2048):
    """x: [B, 768] (f32 or bf16), w: [2, 768] (PyTorch Linear layout), b: [2] -> [B, 2] f32.

    Pass x (and w) as bfloat16 to halve HBM traffic; accumulation stays f32 in-kernel.
    """
    B = x.shape[0]
    assert x.shape[1] == IN_FEATURES
    assert w.shape == (OUT_FEATURES, IN_FEATURES)
    w = w.astype(x.dtype)                       # avoid mixed-dtype dot_general (6 KiB, free)
    max_tm = max(LANE, (max_tm // LANE) * LANE)  # lane-dense out needs 128-multiple tiles
    tm = _pick_tile(B, max_tm)
    grid = (pl.cdiv(B, tm),)
    b2d = b.reshape(OUT_FEATURES, 1)

    cost = pl.CostEstimate(
        flops=2 * B * IN_FEATURES * OUT_FEATURES,
        transcendentals=2 * B * OUT_FEATURES,                  # tanh + sigmoid
        bytes_accessed=(B * IN_FEATURES * x.dtype.itemsize
                        + OUT_FEATURES * IN_FEATURES * w.dtype.itemsize
                        + B * OUT_FEATURES * 4),
    )

    out_t = pl.pallas_call(
        _fakenews_kernel,
        out_shape=jax.ShapeDtypeStruct((OUT_FEATURES, B), jnp.float32),
        grid=grid,
        in_specs=[
            pl.BlockSpec((tm, IN_FEATURES), lambda i: (i, 0)),              # streamed per tile
            pl.BlockSpec((OUT_FEATURES, IN_FEATURES), lambda i: (0, 0)),    # resident weights
            pl.BlockSpec((OUT_FEATURES, 1), lambda i: (0, 0)),              # resident bias
        ],
        out_specs=pl.BlockSpec((OUT_FEATURES, tm), lambda i: (0, i)),       # lane-dense out
        compiler_params=pltpu.CompilerParams(
            dimension_semantics=("parallel",),                 # megacore sharding on v7x
            vmem_limit_bytes=_vmem_limit_bytes(tm, x.dtype.itemsize),
        ),
        cost_estimate=cost,
    )(x, w, b2d)
    # Tiny [2,B] -> [B,2] transpose in the wrapper (8*B bytes; negligible vs 3072*B x-DMA).
    return out_t.T


def init_params(key, mean=0.0, std=0.02):
    # Mirrors FakeNewsClassifier.weight_init(mean, std): weight ~ Normal(mean, std), bias = 0.
    wkey, _ = jax.random.split(key)
    w = mean + std * jax.random.normal(wkey, (OUT_FEATURES, IN_FEATURES), dtype=jnp.float32)
    b = jnp.zeros((OUT_FEATURES,), dtype=jnp.float32)
    return w, b


def _reference(x, w, b):
    # Plain-JAX reference (eval-mode dropout == identity), W in PyTorch [out, in] layout.
    return jax.nn.sigmoid(jnp.tanh(x @ w.T + b[None, :]))


if __name__ == "__main__":
    key = jax.random.PRNGKey(0)
    xk1, xk2, pk = jax.random.split(key, 3)
    w, b = init_params(pk)

    # --- check 1: tiny single-block path (B <= 128, full-extent block), f32, tight parity ---
    B = 8
    x = jax.random.normal(xk1, (B, IN_FEATURES), dtype=jnp.float32)
    out = jax.block_until_ready(fake_news_classifier(x, w, b))
    ref = _reference(x, w, b)
    assert out.shape == (B, OUT_FEATURES)
    assert jnp.allclose(out, ref, atol=1e-5, rtol=1e-5)

    # --- check 2: multi-tile grid incl. ragged last tile (300 = 2*128 + 44), f32 ---
    B2 = 300
    x2 = jax.random.normal(xk2, (B2, IN_FEATURES), dtype=jnp.float32)
    out2 = jax.block_until_ready(fake_news_classifier(x2, w, b, max_tm=128))
    ref2 = _reference(x2, w, b)
    assert out2.shape == (B2, OUT_FEATURES)
    assert jnp.allclose(out2, ref2, atol=1e-5, rtol=1e-5)

    # --- check 3: bf16 activations/weights (halved HBM traffic), f32 accumulate ---
    x2b = x2.astype(jnp.bfloat16)
    wb = w.astype(jnp.bfloat16)
    out3 = jax.block_until_ready(fake_news_classifier(x2b, wb, b, max_tm=128))
    ref3 = _reference(x2b.astype(jnp.float32), wb.astype(jnp.float32), b)
    assert out3.shape == (B2, OUT_FEATURES)
    assert jnp.allclose(out3, ref3, atol=2e-3, rtol=2e-3)

    print("KERNEL_OK")
</pallas_src>

<mosaic_0001>
module attributes {stable_mosaic.version = 11 : i64} {
  func.func @_fakenews_kernel(%arg0: i32, %arg1: memref<8x768xf32, #tpu.memory_space<vmem>>, %arg2: memref<2x768xf32, #tpu.memory_space<vmem>>, %arg3: memref<2x1xf32, #tpu.memory_space<vmem>>, %arg4: memref<2x8xf32, #tpu.memory_space<vmem>>) attributes {dimension_semantics = [#tpu.dimension_semantics<parallel>], iteration_bounds = array<i64: 1>, scalar_prefetch = 0 : i64, scratch_operands = 0 : i64, tpu.core_type = #tpu.core_type<tc>, window_params = [{transform_indices = @transform_0, window_bounds = array<i64: 8, 768>}, {pipeline_mode = #tpu.pipeline_mode<synchronous>, transform_indices = @transform_1, window_bounds = array<i64: 2, 768>}, {pipeline_mode = #tpu.pipeline_mode<synchronous>, transform_indices = @transform_2, window_bounds = array<i64: 2, 1>}, {transform_indices = @transform_3, window_bounds = array<i64: 2, 8>}]} {
    %c0 = arith.constant 0 : index
    %c0_0 = arith.constant 0 : index
    %0 = vector.load %arg1[%c0, %c0_0] : memref<8x768xf32, #tpu.memory_space<vmem>>, vector<8x768xf32>
    %c0_1 = arith.constant 0 : index
    %c0_2 = arith.constant 0 : index
    %1 = vector.load %arg2[%c0_1, %c0_2] : memref<2x768xf32, #tpu.memory_space<vmem>>, vector<2x768xf32>
    %cst = arith.constant dense<0.000000e+00> : vector<2x8xf32>
    %2 = tpu.matmul %1, %0, %cst {dimension_numbers = #tpu.dot_dimension_numbers<[1], [1], [0], [0], [0, 0, 1, 0], [], []>} : vector<2x768xf32>, vector<8x768xf32>, vector<2x8xf32> -> vector<2x8xf32>
    %c0_3 = arith.constant 0 : index
    %c0_4 = arith.constant 0 : index
    %3 = vector.load %arg3[%c0_3, %c0_4] : memref<2x1xf32, #tpu.memory_space<vmem>>, vector<2x1xf32>
    %4 = vector.broadcast %3 : vector<2x1xf32> to vector<2x8xf32>
    %5 = arith.addf %2, %4 : vector<2x8xf32>
    %6 = math.tanh %5 : vector<2x8xf32>
    %7 = arith.negf %6 : vector<2x8xf32>
    %8 = math.exp %7 : vector<2x8xf32>
    %cst_5 = arith.constant 1.000000e+00 : f32
    %9 = vector.broadcast %cst_5 : f32 to vector<2x8xf32>
    %10 = arith.addf %9, %8 : vector<2x8xf32>
    %11 = arith.divf %9, %10 : vector<2x8xf32>
    %c0_6 = arith.constant 0 : index
    %c0_7 = arith.constant 0 : index
    %12 = vector.load %arg4[%c0_6, %c0_7] : memref<2x8xf32, #tpu.memory_space<vmem>>, vector<2x8xf32>
    tpu.vector_store %arg4[%c0_6, %c0_7], %11 {strides = array<i32>} : memref<2x8xf32, #tpu.memory_space<vmem>>, vector<2x8xf32>,
    return
  }
  func.func @transform_0(%arg0: i32) -> (i32, i32) {
    %c0_i32 = arith.constant 0 : i32
    %c0_i32_0 = arith.constant 0 : i32
    return %arg0, %c0_i32 : i32, i32
  }
  func.func @transform_1(%arg0: i32) -> (i32, i32) {
    %c0_i32 = arith.constant 0 : i32
    %c0_i32_0 = arith.constant 0 : i32
    %c0_i32_1 = arith.constant 0 : i32
    return %c0_i32, %c0_i32_0 : i32, i32
  }
  func.func @transform_2(%arg0: i32) -> (i32, i32) {
    %c0_i32 = arith.constant 0 : i32
    %c0_i32_0 = arith.constant 0 : i32
    %c0_i32_1 = arith.constant 0 : i32
    return %c0_i32, %c0_i32_0 : i32, i32
  }
  func.func @transform_3(%arg0: i32) -> (i32, i32) {
    %c0_i32 = arith.constant 0 : i32
    %c0_i32_0 = arith.constant 0 : i32
    return %c0_i32, %arg0 : i32, i32
  }
}

</mosaic_0001>

<llo_original>
// kernel: tpu_custom_call.1
$region0: #{tpu_custom_call.1}
  #allocation0 [shape = 'u32[]', space=smem, size = 0x4, offset = 0x4, fixed_abs, tag = 'smem constant byte address 0x4 - core index']
  #allocation1 [shape = 'u32[144,128]{1,0:T(1,128)}', space=vmem, size = 0x12000, scoped, tag = 'internal scratch']
  %s0 = inlined_call_operand.hbm [shape: f32[8,768], index: 0, kind: input, shape index: {}]
  %s1 = inlined_call_operand.hbm [shape: f32[2,768], index: 1, kind: input, shape index: {}]
  %s2 = inlined_call_operand.vmem [shape: f32[2,1], index: 2, kind: input, shape index: {}]
  %s3 = inlined_call_operand.hbm [shape: f32[2,8], index: 3, kind: output, shape index: {}]
  %s4 = sld [smem:[#allocation0]]
  $region30: #{tpu_custom_call.1} parent=0
    _
  %s6 = ssub.s32 1, %s4
  %s7 = scalar_select 0, %s6, %s4
  $region1: #{tpu_custom_call.1} parent=0
    #allocation2 [shape = 'u8[24576]{0}', space=vmem, size = 0x6000, scoped, tag = 'input window, operand 0, single buffered']
    #allocation3 [shape = 's32[1]{0}', space=sflag, size = 0x4, scoped, tag = 'scoped memory for tpu_custom_call.1']
    #allocation4 [shape = 's32[1]{0}', space=sflag, size = 0x4, scoped, tag = 'scoped memory for tpu_custom_call.1']
    #allocation5 [shape = 'u8[6144]{0}', space=vmem, size = 0x1800, scoped, tag = 'input window, operand 1, single buffered']
    #allocation6 [shape = 's32[1]{0}', space=sflag, size = 0x4, scoped, tag = 'scoped memory for tpu_custom_call.1']
    #allocation7 [shape = 'u8[1024]{0}', space=vmem, size = 0x400, scoped, tag = 'output window, operand 0, single buffered']
    %8 = vsyncpa [#allocation3], 0
    %9 = vsyncpa [#allocation6], 0
    %10 = vsyncpa [#allocation4], 0
    // Predicated region
    $region2: #{tpu_custom_call.1} parent=1 // pred_check
      _
    $region3: #{tpu_custom_call.1} parent=1 // pred_check_branch
      %12 = sbr.rel (0) target = $region5
    $region4: #{tpu_custom_call.1} parent=1 // pred_region
      %s14 = ssub.s32 768, 768
      %15 = vsyncadd [#allocation3], %s14
      %s17 = sshll.u32 [#allocation2], 4
      %s18 = int_to_ptr.vmem [resolvable:$true] %s17
      %20 = dma.hbm_to_vmem [thread:$0]  %s0, 768, %s18, [#allocation3]
    $region5: #{tpu_custom_call.1} parent=1 // pred_fallthru
      _
    // Predicated region
    $region6: #{tpu_custom_call.1} parent=1 // pred_check
      _
    $region7: #{tpu_custom_call.1} parent=1 // pred_check_branch
      %22 = sbr.rel (0) target = $region9
    $region8: #{tpu_custom_call.1} parent=1 // pred_region
      %s24 = ssub.s32 192, 192
      %25 = vsyncadd [#allocation6], %s24
      %s27 = sshll.u32 [#allocation5], 4
      %s28 = int_to_ptr.vmem [resolvable:$true] %s27
      %30 = dma.hbm_to_vmem [thread:$0]  %s1, 192, %s28, [#allocation6]
    $region9: #{tpu_custom_call.1} parent=1 // pred_fallthru
      _
    // Predicated region
    $region10: #{tpu_custom_call.1} parent=1 // pred_check
      _
    $region11: #{tpu_custom_call.1} parent=1 // pred_check_branch
      %32 = sbr.rel (0) target = $region13
    $region12: #{tpu_custom_call.1} parent=1 // pred_region
      _
    $region13: #{tpu_custom_call.1} parent=1 // pred_fallthru
      _
    // Predicated region
    $region14: #{tpu_custom_call.1} parent=1 // pred_check
      _
    $region15: #{tpu_custom_call.1} parent=1 // pred_check_branch
      %34 = sbr.rel (0) target = $region17
    $region16: #{tpu_custom_call.1} parent=1 // pred_region
      %35 = dma.done [#allocation3], 768
    $region17: #{tpu_custom_call.1} parent=1 // pred_fallthru
      _
    // Predicated region
    $region18: #{tpu_custom_call.1} parent=1 // pred_check
      _
    $region19: #{tpu_custom_call.1} parent=1 // pred_check_branch
      %37 = sbr.rel (0) target = $region21
    $region20: #{tpu_custom_call.1} parent=1 // pred_region
      %38 = dma.done [#allocation6], 192
    $region21: #{tpu_custom_call.1} parent=1 // pred_fallthru
      _
    %v39 = vld [vmem:[#allocation2] sm:$0xff]
    %v40 = vld [vmem:[#allocation2 + $0x8] sm:$0xff]
    %v41 = vld [vmem:[#allocation2 + $0x10] sm:$0xff]
    %v42 = vld [vmem:[#allocation2 + $0x18] sm:$0xff]
    %v43 = vld [vmem:[#allocation2 + $0x20] sm:$0xff]
    %v44 = vld [vmem:[#allocation2 + $0x28] sm:$0xff]
    %v45 = vld [vmem:[#allocation5] sm:$0xff]
    %v46 = vld [vmem:[#allocation5 + $0x8] sm:$0xf]
    %v47 = vld [vmem:[%s2] sm:$0x3]
    %49 = vset.pattern.permute.xlu0 0
    %50 = vperm.xlu0 %49, %v47
    %v51 = vpop.permute.xlu0 %50
    %v55 = vcombine.high %v45, %v45
    %v57 = vunpack.c.l.s4 1983009808
    %v58 = vunpack.c.0.s8 %v57
    %v59 = vlaneseq
    %v60 = vshrl.u32 %v59, 7
    %v61 = vsub.s32 %v58, %v60
    %v62 = vrot.slane %v45, %v61
    %v64 = vunpack.c.l.s4 1983009808
    %v65 = vunpack.c.0.s8 %v64
    %v66 = vlaneseq
    %v67 = vshrl.u32 %v66, 7
    %v68 = vsub.s32 %v65, %v67
    %v69 = vrot.slane %v55, %v68
    %v70 = vcombine.high %v62, %v62
    %v71 = vcombine.high %v69, %v69
    %v73 = vunpack.c.l.s4 1983009808
    %v74 = vunpack.c.0.s8 %v73
    %v75 = vlaneseq
    %v76 = vshrl.u32 %v75, 7
    %v77 = vsub.s32 %v74, %v76
    %v78 = vrot.slane %v46, %v77
    %v79 = vcombine.high %v78, %v78
    %86 = vmatprep.subr.mxu0 %v40
    %87 = vmatpush1.xpose.msra.mxu0 %v39
    %88 = vmatprep.subr.mxu0 0.0
    %89 = vmatpush1.xpose.msra.mxu0 0.0
    %90 = vmatprep.subr.mxu0 0.0
    %91 = vmatpush1.xpose.msra.mxu0 0.0
    %92 = vmatprep.subr.mxu0 0.0
    %93 = vmatpush1.xpose.msra.mxu0 0.0
    %94 = vmatprep.subr.mxu0 0.0
    %95 = vmatpush1.xpose.msra.mxu0 0.0
    %96 = vmatprep.subr.mxu0 0.0
    %97 = vmatpush1.xpose.msra.mxu0 0.0
    %98 = vmatprep.subr.mxu0 0.0
    %99 = vmatpush1.xpose.msra.mxu0 0.0
    %100 = vmatprep.subr.mxu0 0.0
    %101 = vmatpush1.xpose.msra.mxu0 0.0
    %102 = vmatprep.subr.mxu0 0.0
    %103 = vmatpush1.xpose.msra.mxu0 0.0
    %104 = vmatprep.subr.mxu0 0.0
    %105 = vmatpush1.xpose.msra.mxu0 0.0
    %106 = vmatprep.subr.mxu0 0.0
    %107 = vmatpush1.xpose.msra.mxu0 0.0
    %108 = vmatprep.subr.mxu0 0.0
    %109 = vmatpush1.xpose.msra.mxu0 0.0
    %110 = vmatprep.subr.mxu0 0.0
    %111 = vmatpush1.xpose.msra.mxu0 0.0
    %112 = vmatprep.subr.mxu0 0.0
    %113 = vmatpush1.xpose.msra.mxu0 0.0
    %114 = vmatprep.subr.mxu0 0.0
    %115 = vmatpush1.xpose.msra.mxu0 0.0
    %116 = vmatprep.subr.mxu0 0.0
    %117 = vmatpush1.xpose.msra.mxu0 0.0
    %118 = vmatprep.subr.mxu0 0.0
    %119 = vmatpush1.xpose.msra.mxu0 0.0
    %120 = vmatprep.subr.mxu0 0.0
    %121 = vmatpush1.xpose.msra.mxu0 0.0
    %122 = vmatprep.subr.mxu0 0.0
    %123 = vmatpush1.xpose.msra.mxu0 0.0
    %124 = vmatprep.subr.mxu0 0.0
    %125 = vmatpush1.xpose.msra.mxu0 0.0
    %126 = vmatprep.subr.mxu0 0.0
    %127 = vmatpush1.xpose.msra.mxu0 0.0
    %128 = vmatprep.subr.mxu0 0.0
    %129 = vmatpush1.xpose.msra.mxu0 0.0
    %130 = vmatprep.subr.mxu0 0.0
    %131 = vmatpush1.xpose.msra.mxu0 0.0
    %132 = vmatprep.subr.mxu0 0.0
    %133 = vmatpush1.xpose.msra.mxu0 0.0
    %134 = vmatprep.subr.mxu0 0.0
    %135 = vmatpush1.xpose.msra.mxu0 0.0
    %136 = vmatprep.subr.mxu0 0.0
    %137 = vmatpush1.xpose.msra.mxu0 0.0
    %138 = vmatprep.subr.mxu0 0.0
    %139 = vmatpush1.xpose.msra.mxu0 0.0
    %140 = vmatprep.subr.mxu0 0.0
    %141 = vmatpush1.xpose.msra.mxu0 0.0
    %142 = vmatprep.subr.mxu0 0.0
    %143 = vmatpush1.xpose.msra.mxu0 0.0
    %144 = vmatprep.subr.mxu0 0.0
    %145 = vmatpush1.xpose.msra.mxu0 0.0
    %146 = vmatprep.subr.mxu0 0.0
    %147 = vmatpush1.xpose.msra.mxu0 0.0
    %148 = vmatprep.subr.mxu0 0.0
    %149 = vmatpush1.xpose.msra.mxu0 0.0
    %150 = vmatprep.mubr.f32.mxu0 %v70
    %151 = vmatmul.mubr.f32.gmra.mrb[0].mxu0 %v62
    %v152 = vpop.f32.mrb[0].mxu0
    %v153 = vadd.f32 %v51, %v152
    %v154 = vpop.f32.mrb[0].mxu0
    %155 = vdwg.mxu0
    %156 = vmatprep.subr.mxu0 %v42
    %157 = vmatpush1.xpose.msra.mxu0 %v41
    %158 = vmatprep.subr.mxu0 0.0
    %159 = vmatpush1.xpose.msra.mxu0 0.0
    %160 = vmatprep.subr.mxu0 0.0
    %161 = vmatpush1.xpose.msra.mxu0 0.0
    %162 = vmatprep.subr.mxu0 0.0
    %163 = vmatpush1.xpose.msra.mxu0 0.0
    %164 = vmatprep.subr.mxu0 0.0
    %165 = vmatpush1.xpose.msra.mxu0 0.0
    %166 = vmatprep.subr.mxu0 0.0
    %167 = vmatpush1.xpose.msra.mxu0 0.0
    %168 = vmatprep.subr.mxu0 0.0
    %169 = vmatpush1.xpose.msra.mxu0 0.0
    %170 = vmatprep.subr.mxu0 0.0
    %171 = vmatpush1.xpose.msra.mxu0 0.0
    %172 = vmatprep.subr.mxu0 0.0
    %173 = vmatpush1.xpose.msra.mxu0 0.0
    %174 = vmatprep.subr.mxu0 0.0
    %175 = vmatpush1.xpose.msra.mxu0 0.0
    %176 = vmatprep.subr.mxu0 0.0
    %177 = vmatpush1.xpose.msra.mxu0 0.0
    %178 = vmatprep.subr.mxu0 0.0
    %179 = vmatpush1.xpose.msra.mxu0 0.0
    %180 = vmatprep.subr.mxu0 0.0
    %181 = vmatpush1.xpose.msra.mxu0 0.0
    %182 = vmatprep.subr.mxu0 0.0
    %183 = vmatpush1.xpose.msra.mxu0 0.0
    %184 = vmatprep.subr.mxu0 0.0
    %185 = vmatpush1.xpose.msra.mxu0 0.0
    %186 = vmatprep.subr.mxu0 0.0
    %187 = vmatpush1.xpose.msra.mxu0 0.0
    %188 = vmatprep.subr.mxu0 0.0
    %189 = vmatpush1.xpose.msra.mxu0 0.0
    %190 = vmatprep.subr.mxu0 0.0
    %191 = vmatpush1.xpose.msra.mxu0 0.0
    %192 = vmatprep.subr.mxu0 0.0
    %193 = vmatpush1.xpose.msra.mxu0 0.0
    %194 = vmatprep.subr.mxu0 0.0
    %195 = vmatpush1.xpose.msra.mxu0 0.0
    %196 = vmatprep.subr.mxu0 0.0
    %197 = vmatpush1.xpose.msra.mxu0 0.0
    %198 = vmatprep.subr.mxu0 0.0
    %199 = vmatpush1.xpose.msra.mxu0 0.0
    %200 = vmatprep.subr.mxu0 0.0
    %201 = vmatpush1.xpose.msra.mxu0 0.0
    %202 = vmatprep.subr.mxu0 0.0
    %203 = vmatpush1.xpose.msra.mxu0 0.0
    %204 = vmatprep.subr.mxu0 0.0
    %205 = vmatpush1.xpose.msra.mxu0 0.0
    %206 = vmatprep.subr.mxu0 0.0
    %207 = vmatpush1.xpose.msra.mxu0 0.0
    %208 = vmatprep.subr.mxu0 0.0
    %209 = vmatpush1.xpose.msra.mxu0 0.0
    %210 = vmatprep.subr.mxu0 0.0
    %211 = vmatpush1.xpose.msra.mxu0 0.0
    %212 = vmatprep.subr.mxu0 0.0
    %213 = vmatpush1.xpose.msra.mxu0 0.0
    %214 = vmatprep.subr.mxu0 0.0
    %215 = vmatpush1.xpose.msra.mxu0 0.0
    %216 = vmatprep.subr.mxu0 0.0
    %217 = vmatpush1.xpose.msra.mxu0 0.0
    %218 = vmatprep.subr.mxu0 0.0
    %219 = vmatpush1.xpose.msra.mxu0 0.0
    %220 = vmatprep.mubr.f32.mxu0 %v71
    %221 = vmatmul.mubr.f32.gmra.mrb[0].mxu0 %v69
    %v222 = vpop.f32.mrb[0].mxu0
    %v223 = vadd.f32 %v153, %v222
    %v224 = vpop.f32.mrb[0].mxu0
    %225 = vdwg.mxu0
    %226 = vmatprep.subr.mxu0 %v44
    %227 = vmatpush1.xpose.msra.mxu0 %v43
    %228 = vmatprep.subr.mxu0 0.0
    %229 = vmatpush1.xpose.msra.mxu0 0.0
    %230 = vmatprep.subr.mxu0 0.0
    %231 = vmatpush1.xpose.msra.mxu0 0.0
    %232 = vmatprep.subr.mxu0 0.0
    %233 = vmatpush1.xpose.msra.mxu0 0.0
    %234 = vmatprep.subr.mxu0 0.0
    %235 = vmatpush1.xpose.msra.mxu0 0.0
    %236 = vmatprep.subr.mxu0 0.0
    %237 = vmatpush1.xpose.msra.mxu0 0.0
    %238 = vmatprep.subr.mxu0 0.0
    %239 = vmatpush1.xpose.msra.mxu0 0.0
    %240 = vmatprep.subr.mxu0 0.0
    %241 = vmatpush1.xpose.msra.mxu0 0.0
    %242 = vmatprep.subr.mxu0 0.0
    %243 = vmatpush1.xpose.msra.mxu0 0.0
    %244 = vmatprep.subr.mxu0 0.0
    %245 = vmatpush1.xpose.msra.mxu0 0.0
    %246 = vmatprep.subr.mxu0 0.0
    %247 = vmatpush1.xpose.msra.mxu0 0.0
    %248 = vmatprep.subr.mxu0 0.0
    %249 = vmatpush1.xpose.msra.mxu0 0.0
    %250 = vmatprep.subr.mxu0 0.0
    %251 = vmatpush1.xpose.msra.mxu0 0.0
    %252 = vmatprep.subr.mxu0 0.0
    %253 = vmatpush1.xpose.msra.mxu0 0.0
    %254 = vmatprep.subr.mxu0 0.0
    %255 = vmatpush1.xpose.msra.mxu0 0.0
    %256 = vmatprep.subr.mxu0 0.0
    %257 = vmatpush1.xpose.msra.mxu0 0.0
    %258 = vmatprep.subr.mxu0 0.0
    %259 = vmatpush1.xpose.msra.mxu0 0.0
    %260 = vmatprep.subr.mxu0 0.0
    %261 = vmatpush1.xpose.msra.mxu0 0.0
    %262 = vmatprep.subr.mxu0 0.0
    %263 = vmatpush1.xpose.msra.mxu0 0.0
    %264 = vmatprep.subr.mxu0 0.0
    %265 = vmatpush1.xpose.msra.mxu0 0.0
    %266 = vmatprep.subr.mxu0 0.0
    %267 = vmatpush1.xpose.msra.mxu0 0.0
    %268 = vmatprep.subr.mxu0 0.0
    %269 = vmatpush1.xpose.msra.mxu0 0.0
    %270 = vmatprep.subr.mxu0 0.0
    %271 = vmatpush1.xpose.msra.mxu0 0.0
    %272 = vmatprep.subr.mxu0 0.0
    %273 = vmatpush1.xpose.msra.mxu0 0.0
    %274 = vmatprep.subr.mxu0 0.0
    %275 = vmatpush1.xpose.msra.mxu0 0.0
    %276 = vmatprep.subr.mxu0 0.0
    %277 = vmatpush1.xpose.msra.mxu0 0.0
    %278 = vmatprep.subr.mxu0 0.0
    %279 = vmatpush1.xpose.msra.mxu0 0.0
    %280 = vmatprep.subr.mxu0 0.0
    %281 = vmatpush1.xpose.msra.mxu0 0.0
    %282 = vmatprep.subr.mxu0 0.0
    %283 = vmatpush1.xpose.msra.mxu0 0.0
    %284 = vmatprep.subr.mxu0 0.0
    %285 = vmatpush1.xpose.msra.mxu0 0.0
    %286 = vmatprep.subr.mxu0 0.0
    %287 = vmatpush1.xpose.msra.mxu0 0.0
    %288 = vmatprep.subr.mxu0 0.0
    %289 = vmatpush1.xpose.msra.mxu0 0.0
    %290 = vmatprep.mubr.f32.mxu0 %v79
    %291 = vmatmul.mubr.f32.gmra.mrb[0].mxu0 %v78
    %v292 = vpop.f32.mrb[0].mxu0
    %v293 = vadd.f32 %v223, %v292
    %v294 = vpop.f32.mrb[0].mxu0
    %295 = vdwg.mxu0
    %v296 = vtanh.pop %v293
    %v297 = vxor.u32 %v296, 2147483648
    %v298 = vmul.f32 %v297, 1.442695
    %v299 = vpow.pop %v298
    %v300 = vadd.f32 %v299, 1.0
    %v301 = vrcp.pop %v300
    %v302 = vmul.f32 1.0, %v301
    %vm303 = vcmask 58368
    %304 = vst.msk [vmem:[#allocation7] sm:$0x3] %vm303, %v302
    // Predicated region
    $region22: #{tpu_custom_call.1} parent=1 // pred_check
      _
    $region23: #{tpu_custom_call.1} parent=1 // pred_check_branch
      %306 = sbr.rel (0) target = $region25
    $region24: #{tpu_custom_call.1} parent=1 // pred_region
      %s308 = ssub.s32 32, 32
      %309 = vsyncadd [#allocation4], %s308
      %s311 = sshll.u32 [#allocation7], 4
      %s312 = int_to_ptr.vmem [resolvable:$true] %s311
      %314 = dma.vmem_to_hbm [thread:$0]  %s312, 32, %s3, [#allocation4]
    $region25: #{tpu_custom_call.1} parent=1 // pred_fallthru
      _
    // Predicated region
    $region26: #{tpu_custom_call.1} parent=1 // pred_check
      _
    $region27: #{tpu_custom_call.1} parent=1 // pred_check_branch
      %316 = sbr.rel (0) target = $region29
    $region28: #{tpu_custom_call.1} parent=1 // pred_region
      %317 = dma.done [#allocation4], 32
    $region29: #{tpu_custom_call.1} parent=1 // pred_fallthru
      _
    %318 = vsyncpa [#allocation3], 1
    %319 = vsyncpa [#allocation6], 1
    %320 = vsyncpa [#allocation4], 1

</llo_original>
